<compile_context>
chip_gen: v7x
topology: tpu7x:2x2x1
jax: 0.10.0
libtpu: 0.0.40
codegen_flags: <defaults>
</compile_context>

<pallas_src>
import functools

import jax
import jax.numpy as jnp
from jax.experimental import pallas as pl
from jax.experimental.pallas import tpu as pltpu


def _patch_embed_kernel(x_ref, w_ref, b_ref, o_ref):
    # x_ref: (TM, Kp) bf16, w_ref: (Kp, TN) bf16, b_ref: (1, TN) f32.
    acc = jnp.dot(x_ref[...], w_ref[...], preferred_element_type=jnp.float32)
    o_ref[...] = (acc + b_ref[...]).astype(o_ref.dtype)


def _round_up(x, m):
    return ((x + m - 1) // m) * m


def _vmem_capacity_bytes():
    """Physical VMEM per core; conservative fallback if the query fails."""
    try:
        return int(pltpu.get_tpu_info().vmem_capacity_bytes)
    except Exception:
        return 64 * 1024 * 1024  # v7x per-TensorCore VMEM (smallest current part)


def _choose_tiles(M, Kp, N, cdt_size, out_size, budget):
    """Pick (TM, Mp, TN, Np) under a VMEM byte budget.

    Budgeting assumes double-buffered X / output tiles and (conservatively)
    a double-buffered W tile plus the bias row.
    """
    bias_bytes = 2 * _round_up(N, 128) * 4

    # --- N tiling: keep the whole weight VMEM-resident whenever possible. ---
    w_full = 2 * Kp * N * cdt_size
    per_row_full = 2 * Kp * cdt_size + 2 * N * out_size
    if w_full + bias_bytes + 32 * per_row_full <= budget:
        TN, Np = N, N                      # single resident W tile, no N padding
    else:
        # Rare fallback (very large hidden*K): split N along 256-multiples,
        # matching the 256-wide MXU on v6e/v7x.
        TN = 256
        for cand in (2048, 1024, 512, 256):
            w_bytes = 2 * Kp * cand * cdt_size
            per_row = 2 * Kp * cdt_size + 2 * cand * out_size
            if w_bytes + bias_bytes + 128 * per_row <= budget:
                TN = cand
                break
        Np = _round_up(N, TN)

    # --- M tiling under the remaining budget. ---
    per_row = 2 * Kp * cdt_size + 2 * TN * out_size
    tm_cap = max((budget - 2 * Kp * TN * cdt_size - bias_bytes) // per_row, 8)

    # Prefer large multiples of 16 that divide M exactly: amortized per-step
    # overhead, clean bf16 sublane packing, and no M padding / output slice.
    for cand in (2048, 1024, 512, 256, 128, 64, 32, 16):
        if cand <= tm_cap and M % cand == 0:
            return cand, M, TN, Np
    if M <= min(tm_cap, 1024):
        return M, M, TN, Np                # small M: one full tile (legal block)
    tm = max(16, (min(int(tm_cap), 512) // 16) * 16)
    return tm, _round_up(M, tm), TN, Np


def patch_embeddings(x, weight, bias, patch_size, *, compute_dtype=jnp.bfloat16):
    """x: (B, C, H, W) NCHW; weight: (hidden, C, P, P); bias: (hidden,).

    Returns (B, num_patches, hidden), matching
    Conv2d(stride=P)(x).flatten(2).transpose(1, 2).
    """
    B, C, H, W = x.shape
    P = patch_size
    hidden = weight.shape[0]
    hp, wp = H // P, W // P
    num_patches = hp * wp
    out_dtype = x.dtype
    cdt = jnp.dtype(compute_dtype)
    out_size = jnp.dtype(out_dtype).itemsize

    # --- Glue: NCHW -> (M, K) patch matrix, inner order (c, kh, kw).  Single
    # fused transpose + cast + pad pass under jit.
    # TODO(synk): fold this relayout into the kernel to save one image-sized
    # HBM round trip.
    xp = x.reshape(B, C, hp, P, wp, P)
    xp = jnp.transpose(xp, (0, 2, 4, 1, 3, 5)).reshape(B * num_patches, C * P * P)
    wm = weight.reshape(hidden, C * P * P).T            # (K, N), same inner order
    bm = bias.reshape(1, hidden).astype(jnp.float32)    # (1, N)

    M, K = xp.shape
    N = hidden
    Kp = _round_up(K, 128)       # lane-dense contraction dim; zero rows are inert

    vmem_cap = _vmem_capacity_bytes()
    budget = (vmem_cap * 3) // 4           # leave headroom for Mosaic scratch
    TM, Mp, TN, Np = _choose_tiles(M, Kp, N, cdt.itemsize, out_size, budget)

    xp_p = jnp.pad(xp.astype(cdt), ((0, Mp - M), (0, Kp - K)))
    wm_p = jnp.pad(wm.astype(cdt), ((0, Kp - K), (0, Np - N)))
    bm_p = jnp.pad(bm, ((0, 0), (0, Np - N)))

    n_m, n_n = Mp // TM, Np // TN
    grid = (n_n, n_m)   # N outermost: W tile index constant across the M sweep

    vmem_need = ((2 * TM * Kp + 2 * Kp * TN) * cdt.itemsize
                 + 2 * TM * TN * out_size + 2 * Np * 4)
    vmem_limit = int(min(max(vmem_need + (2 << 20), 16 << 20), vmem_cap))

    bytes_accessed = (n_n * Mp * Kp * cdt.itemsize      # X (re-read once per N tile)
                      + Kp * Np * cdt.itemsize          # W (each tile fetched once)
                      + Np * 4                          # bias
                      + Mp * Np * out_size)             # Y

    out = pl.pallas_call(
        _patch_embed_kernel,
        out_shape=jax.ShapeDtypeStruct((Mp, Np), out_dtype),
        grid_spec=pltpu.PrefetchScalarGridSpec(
            num_scalar_prefetch=0,
            grid=grid,
            in_specs=[
                pl.BlockSpec((TM, Kp), lambda j, i: (i, 0)),   # X: streamed over M
                pl.BlockSpec((Kp, TN), lambda j, i: (0, j)),   # W: resident per N tile
                pl.BlockSpec((1, TN), lambda j, i: (0, j)),    # bias
            ],
            out_specs=pl.BlockSpec((TM, TN), lambda j, i: (i, j)),
        ),
        compiler_params=pltpu.CompilerParams(
            dimension_semantics=("parallel", "parallel"),
            vmem_limit_bytes=vmem_limit,
        ),
        cost_estimate=pl.CostEstimate(
            flops=2 * Mp * Kp * Np,
            transcendentals=0,
            bytes_accessed=bytes_accessed,
        ),
    )(xp_p, wm_p, bm_p)

    if Mp != M or Np != N:
        out = out[:M, :N]
    return out.reshape(B, num_patches, hidden)


if __name__ == "__main__":
    # Small config consistent with the module's __init__.
    config = dict(image_size=16, patch_size=4, num_channels=4, hidden_size=32)
    B = 2
    C = config["num_channels"]
    H = Wd = config["image_size"]
    P = config["patch_size"]
    hidden = config["hidden_size"]

    key = jax.random.PRNGKey(0)
    kx, kw, kb = jax.random.split(key, 3)
    x = jax.random.normal(kx, (B, C, H, Wd), dtype=jnp.float32)
    # Deterministic "Conv2d" parameters (same shapes as nn.Conv2d would hold).
    weight = jax.random.normal(kw, (hidden, C, P, P), dtype=jnp.float32) * 0.02
    bias = jax.random.normal(kb, (hidden,), dtype=jnp.float32) * 0.02

    pe = jax.jit(functools.partial(patch_embeddings, patch_size=P))
    out = jax.block_until_ready(pe(x, weight, bias))

    # Cross-check against a plain-JAX f32 reference of the same conv-as-matmul.
    hp, wp = H // P, Wd // P
    xp = x.reshape(B, C, hp, P, wp, P).transpose(0, 2, 4, 1, 3, 5)
    xp = xp.reshape(B * hp * wp, C * P * P)
    ref = (xp @ weight.reshape(hidden, -1).T + bias).reshape(B, hp * wp, hidden)

    assert out.shape == (B, (H // P) * (Wd // P), hidden)
    assert out.dtype == x.dtype
    # Inputs are cast to bf16 for the MXU (f32 accumulation), so tolerance is
    # slightly looser than a pure-f32 check.
    assert jnp.allclose(out, ref, atol=1e-2, rtol=1e-2), float(jnp.max(jnp.abs(out - ref)))

    print("KERNEL_OK")
</pallas_src>

<mosaic_0001>
module attributes {stable_mosaic.version = 11 : i64} {
  func.func @_patch_embed_kernel(%arg0: i32, %arg1: i32, %arg2: memref<32x128xbf16, #tpu.memory_space<vmem>>, %arg3: memref<128x32xbf16, #tpu.memory_space<vmem>>, %arg4: memref<1x32xf32, #tpu.memory_space<vmem>>, %arg5: memref<32x32xf32, #tpu.memory_space<vmem>>) attributes {dimension_semantics = [#tpu.dimension_semantics<parallel>, #tpu.dimension_semantics<parallel>], iteration_bounds = array<i64: 1, 1>, scalar_prefetch = 0 : i64, scratch_operands = 0 : i64, tpu.core_type = #tpu.core_type<tc>, window_params = [{transform_indices = @transform_0, window_bounds = array<i64: 32, 128>}, {transform_indices = @transform_1, window_bounds = array<i64: 128, 32>}, {transform_indices = @transform_2, window_bounds = array<i64: 1, 32>}, {transform_indices = @transform_3, window_bounds = array<i64: 32, 32>}]} {
    %c0 = arith.constant 0 : index
    %c0_0 = arith.constant 0 : index
    %0 = vector.load %arg2[%c0, %c0_0] : memref<32x128xbf16, #tpu.memory_space<vmem>>, vector<32x128xbf16>
    %c0_1 = arith.constant 0 : index
    %c0_2 = arith.constant 0 : index
    %1 = vector.load %arg3[%c0_1, %c0_2] : memref<128x32xbf16, #tpu.memory_space<vmem>>, vector<128x32xbf16>
    %cst = arith.constant dense<0.000000e+00> : vector<32x32xf32>
    %2 = tpu.matmul %0, %1, %cst {dimension_numbers = #tpu.dot_dimension_numbers<[1], [0], [0], [1], [0, 0, 1, 1], [], []>} : vector<32x128xbf16>, vector<128x32xbf16>, vector<32x32xf32> -> vector<32x32xf32>
    %c0_3 = arith.constant 0 : index
    %c0_4 = arith.constant 0 : index
    %3 = vector.load %arg4[%c0_3, %c0_4] : memref<1x32xf32, #tpu.memory_space<vmem>>, vector<1x32xf32>
    %4 = vector.broadcast %3 : vector<1x32xf32> to vector<32x32xf32>
    %5 = arith.addf %2, %4 : vector<32x32xf32>
    %c0_5 = arith.constant 0 : index
    %c0_6 = arith.constant 0 : index
    %6 = vector.load %arg5[%c0_5, %c0_6] : memref<32x32xf32, #tpu.memory_space<vmem>>, vector<32x32xf32>
    tpu.vector_store %arg5[%c0_5, %c0_6], %5 {strides = array<i32>} : memref<32x32xf32, #tpu.memory_space<vmem>>, vector<32x32xf32>,
    return
  }
  func.func @transform_0(%arg0: i32, %arg1: i32) -> (i32, i32) {
    %c0_i32 = arith.constant 0 : i32
    %c0_i32_0 = arith.constant 0 : i32
    return %arg1, %c0_i32 : i32, i32
  }
  func.func @transform_1(%arg0: i32, %arg1: i32) -> (i32, i32) {
    %c0_i32 = arith.constant 0 : i32
    %c0_i32_0 = arith.constant 0 : i32
    return %c0_i32, %arg0 : i32, i32
  }
  func.func @transform_2(%arg0: i32, %arg1: i32) -> (i32, i32) {
    %c0_i32 = arith.constant 0 : i32
    %c0_i32_0 = arith.constant 0 : i32
    return %c0_i32, %arg0 : i32, i32
  }
  func.func @transform_3(%arg0: i32, %arg1: i32) -> (i32, i32) {
    %c0_i32 = arith.constant 0 : i32
    return %arg1, %arg0 : i32, i32
  }
}

</mosaic_0001>

<llo_original>
// kernel: patch_embeddings.1
$region0: #{patch_embeddings.1}
  #allocation0 [shape = 'u32[]', space=smem, size = 0x4, offset = 0x4, fixed_abs, tag = 'smem constant byte address 0x4 - core index']
  #allocation1 [shape = 'u32[144,128]{1,0:T(1,128)}', space=vmem, size = 0x12000, scoped, tag = 'internal scratch']
  %s0 = inlined_call_operand.vmem [shape: bf16[32,128], index: 0, kind: input, shape index: {}]
  %s1 = inlined_call_operand.vmem [shape: bf16[128,32], index: 1, kind: input, shape index: {}]
  %s2 = inlined_call_operand.vmem [shape: f32[1,32], index: 2, kind: input, shape index: {}]
  %s3 = inlined_call_operand.hbm [shape: f32[32,32], index: 3, kind: output, shape index: {}]
  %s4 = sld [smem:[#allocation0]]
  $region22: #{patch_embeddings.1} parent=0
    _
  %s6 = ssub.s32 1, %s4
  %s7 = scalar_select 0, %s6, %s4
  $region1: #{patch_embeddings.1} parent=0
    #allocation2 [shape = 'u8[16384]{0}', space=vmem, size = 0x4000, scoped, tag = 'output window, operand 0, single buffered']
    #allocation3 [shape = 's32[1]{0}', space=sflag, size = 0x4, scoped, tag = 'scoped memory for patch_embeddings.1']
    %8 = vsyncpa [#allocation3], 0
    // Predicated region
    $region2: #{patch_embeddings.1} parent=1 // pred_check
      _
    $region3: #{patch_embeddings.1} parent=1 // pred_check_branch
      %10 = sbr.rel (0) target = $region5
    $region4: #{patch_embeddings.1} parent=1 // pred_region
      _
    $region5: #{patch_embeddings.1} parent=1 // pred_fallthru
      _
    // Predicated region
    $region6: #{patch_embeddings.1} parent=1 // pred_check
      _
    $region7: #{patch_embeddings.1} parent=1 // pred_check_branch
      %12 = sbr.rel (0) target = $region9
    $region8: #{patch_embeddings.1} parent=1 // pred_region
      _
    $region9: #{patch_embeddings.1} parent=1 // pred_fallthru
      _
    // Predicated region
    $region10: #{patch_embeddings.1} parent=1 // pred_check
      _
    $region11: #{patch_embeddings.1} parent=1 // pred_check_branch
      %14 = sbr.rel (0) target = $region13
    $region12: #{patch_embeddings.1} parent=1 // pred_region
      _
    $region13: #{patch_embeddings.1} parent=1 // pred_fallthru
      _
    %v16 = vld [vmem:[%s0] sm:$0xf]
    %v17 = vld [vmem:[%s0 + $0x4] sm:$0xf]
    %v18 = vld [vmem:[%s0 + $0x8] sm:$0xf]
    %v19 = vld [vmem:[%s0 + $0xc] sm:$0xf]
    %v20 = vld [vmem:[%s1] sm:$0xf]
    %v21 = vld [vmem:[%s1 + $0x4] sm:$0xf]
    %v22 = vld [vmem:[%s1 + $0x8] sm:$0xf]
    %v23 = vld [vmem:[%s1 + $0xc] sm:$0xf]
    %v24 = vld [vmem:[%s1 + $0x10] sm:$0xf]
    %v25 = vld [vmem:[%s1 + $0x14] sm:$0xf]
    %v26 = vld [vmem:[%s1 + $0x18] sm:$0xf]
    %v27 = vld [vmem:[%s1 + $0x1c] sm:$0xf]
    %v28 = vld [vmem:[%s1 + $0x20] sm:$0xf]
    %v29 = vld [vmem:[%s1 + $0x24] sm:$0xf]
    %v30 = vld [vmem:[%s1 + $0x28] sm:$0xf]
    %v31 = vld [vmem:[%s1 + $0x2c] sm:$0xf]
    %v32 = vld [vmem:[%s1 + $0x30] sm:$0xf]
    %v33 = vld [vmem:[%s1 + $0x34] sm:$0xf]
    %v34 = vld [vmem:[%s1 + $0x38] sm:$0xf]
    %v35 = vld [vmem:[%s1 + $0x3c] sm:$0xf]
    %v36 = vld [vmem:[%s2] sm:$0x1]
    %v38 = vlaneseq
    %v39 = vshrl.u32 %v38, 7
    %v40 = vsub.s32 0, %v39
    %v41 = vrot.slane %v36, %v40
    %v47 = vunpack.c.l.b16 %v16
    %v48 = vunpack.c.l.b16 %v17
    %v49 = vunpack.c.l.b16 %v18
    %v50 = vunpack.c.l.b16 %v19
    %v51 = vpack.c.b16 %v48, %v47
    %v52 = vpack.c.b16 %v50, %v49
    %v71 = vunpack.c.l.b16 %v20
    %v72 = vunpack.c.l.b16 %v21
    %v73 = vunpack.c.l.b16 %v22
    %v74 = vunpack.c.l.b16 %v23
    %v75 = vunpack.c.l.b16 %v24
    %v76 = vunpack.c.l.b16 %v25
    %v77 = vunpack.c.l.b16 %v26
    %v78 = vunpack.c.l.b16 %v27
    %v79 = vunpack.c.l.b16 %v28
    %v80 = vunpack.c.l.b16 %v29
    %v81 = vunpack.c.l.b16 %v30
    %v82 = vunpack.c.l.b16 %v31
    %v83 = vunpack.c.l.b16 %v32
    %v84 = vunpack.c.l.b16 %v33
    %v85 = vunpack.c.l.b16 %v34
    %v86 = vunpack.c.l.b16 %v35
    %v87 = vpack.c.b16 %v72, %v71
    %v88 = vpack.c.b16 %v74, %v73
    %v89 = vpack.c.b16 %v76, %v75
    %v90 = vpack.c.b16 %v78, %v77
    %v91 = vpack.c.b16 %v80, %v79
    %v92 = vpack.c.b16 %v82, %v81
    %v93 = vpack.c.b16 %v84, %v83
    %v94 = vpack.c.b16 %v86, %v85
    %103 = vmatprep.subr.bf16.mxu0 0
    %104 = vmatpush1.bf16.msra.mxu0 %v87
    %105 = vmatprep.subr.bf16.mxu0 0
    %106 = vmatpush1.bf16.msra.mxu0 %v88
    %107 = vmatprep.subr.bf16.mxu0 0
    %108 = vmatpush1.bf16.msra.mxu0 %v89
    %109 = vmatprep.subr.bf16.mxu0 0
    %110 = vmatpush1.bf16.msra.mxu0 %v90
    %111 = vmatprep.subr.bf16.mxu0 0
    %112 = vmatpush1.bf16.msra.mxu0 %v91
    %113 = vmatprep.subr.bf16.mxu0 0
    %114 = vmatpush1.bf16.msra.mxu0 %v92
    %115 = vmatprep.subr.bf16.mxu0 0
    %116 = vmatpush1.bf16.msra.mxu0 %v93
    %117 = vmatprep.subr.bf16.mxu0 0
    %118 = vmatpush1.bf16.msra.mxu0 %v94
    %119 = vmatprep.subr.bf16.mxu0 0
    %120 = vmatpush1.bf16.msra.mxu0 0
    %121 = vmatprep.subr.bf16.mxu0 0
    %122 = vmatpush1.bf16.msra.mxu0 0
    %123 = vmatprep.subr.bf16.mxu0 0
    %124 = vmatpush1.bf16.msra.mxu0 0
    %125 = vmatprep.subr.bf16.mxu0 0
    %126 = vmatpush1.bf16.msra.mxu0 0
    %127 = vmatprep.subr.bf16.mxu0 0
    %128 = vmatpush1.bf16.msra.mxu0 0
    %129 = vmatprep.subr.bf16.mxu0 0
    %130 = vmatpush1.bf16.msra.mxu0 0
    %131 = vmatprep.subr.bf16.mxu0 0
    %132 = vmatpush1.bf16.msra.mxu0 0
    %133 = vmatprep.subr.bf16.mxu0 0
    %134 = vmatpush1.bf16.msra.mxu0 0
    %135 = vmatprep.mubr.bf16.mxu0 0
    %136 = vmatmul.mubr.bf16.gmra.mrb[0].mxu0 %v51
    %v137 = vpop.f32.mrb[0].mxu0
    %v138 = vadd.f32 %v41, %v137
    %v139 = vpop.f32.mrb[0].mxu0
    %v140 = vpop.f32.mrb[0].mxu0
    %v141 = vadd.f32 %v41, %v140
    %v142 = vpop.f32.mrb[0].mxu0
    %143 = vmatprep.mubr.bf16.mxu0 0
    %144 = vmatmul.mubr.bf16.gmra.mrb[0].mxu0 %v52
    %v145 = vpop.f32.mrb[0].mxu0
    %v146 = vadd.f32 %v41, %v145
    %v147 = vpop.f32.mrb[0].mxu0
    %v148 = vpop.f32.mrb[0].mxu0
    %v149 = vadd.f32 %v41, %v148
    %v150 = vpop.f32.mrb[0].mxu0
    %151 = vdwg.mxu0
    %vm152 = vcmask 261120
    %153 = vst.msk [vmem:[#allocation2] sm:$0xff] %vm152, %v138
    %154 = vst.msk [vmem:[#allocation2 + $0x8] sm:$0xff] %vm152, %v141
    %155 = vst.msk [vmem:[#allocation2 + $0x10] sm:$0xff] %vm152, %v146
    %156 = vst.msk [vmem:[#allocation2 + $0x18] sm:$0xff] %vm152, %v149
    // Predicated region
    $region14: #{patch_embeddings.1} parent=1 // pred_check
      _
    $region15: #{patch_embeddings.1} parent=1 // pred_check_branch
      %158 = sbr.rel (0) target = $region17
    $region16: #{patch_embeddings.1} parent=1 // pred_region
      %s160 = ssub.s32 512, 512
      %161 = vsyncadd [#allocation3], %s160
      %s162 = sshll.u32 [#allocation2], 4
      %s163 = int_to_ptr.vmem [resolvable:$true] %s162
      %168 = dma.vmem_to_hbm [thread:$0]  %s163, 512, %s3, [#allocation3], 128, 128, 8
    $region17: #{patch_embeddings.1} parent=1 // pred_fallthru
      _
    // Predicated region
    $region18: #{patch_embeddings.1} parent=1 // pred_check
      _
    $region19: #{patch_embeddings.1} parent=1 // pred_check_branch
      %170 = sbr.rel (0) target = $region21
    $region20: #{patch_embeddings.1} parent=1 // pred_region
      %171 = dma.done [#allocation3], 512
    $region21: #{patch_embeddings.1} parent=1 // pred_fallthru
      _
    %172 = vsyncpa [#allocation3], 1

</llo_original>
